<compile_context>
chip_gen: v7x
topology: tpu7x:2x2x1
jax: 0.10.0
libtpu: 0.0.40
codegen_flags: <defaults>
</compile_context>

<pallas_src>
import jax
import jax.numpy as jnp
from jax.experimental import pallas as pl
from jax.experimental.pallas import tpu as pltpu


def _fnn_kernel(x_ref, w1_ref, b1_ref, w2_ref, b2_ref, o_ref):
    # x_ref : (C_in, s_tile)  -- features on sublanes, timesteps on lanes
    # w1_ref: (F1, C_in)      -- PyTorch Linear layout, used as matmul LHS
    # b1_ref: (F1, 1)
    # w2_ref: (F2, F1)
    # b2_ref: (F2, 1)
    # o_ref : (F2, s_tile)    -- lane-dense output (timesteps on lanes)
    h = jnp.dot(w1_ref[...], x_ref[...], preferred_element_type=jnp.float32)
    h = jnp.maximum(h + b1_ref[...], 0.0)
    y = jnp.dot(w2_ref[...], h, preferred_element_type=jnp.float32)
    o_ref[...] = jnp.maximum(y + b2_ref[...], 0.0).astype(o_ref.dtype)


def _pick_seq_tile(S, C_in, F2, itemsize, target=2048, vmem_budget=12 << 20):
    """Choose (s_tile, S_pad): a lane-aligned timestep tile and padded seq len.

    s_tile is a multiple of 128 dividing S_pad (or the whole S when S <= 128),
    capped so that double-buffered input + output tiles fit `vmem_budget`.
    """
    if S <= 128:
        return S, S
    S_pad = ((S + 127) // 128) * 128
    # Double-buffered x tile + double-buffered output tile per timestep.
    bytes_per_ts = 2 * (C_in * itemsize + F2 * max(itemsize, 4))
    cap = max(128, (vmem_budget // bytes_per_ts) // 128 * 128)
    t = max(128, min(target, S_pad, cap))
    t -= t % 128
    while S_pad % t:
        t -= 128
    return t, S_pad


def sequential_fnn(conv_embed, w1, b1, w2, b2, *, seq_tile=2048):
    """conv_embed: (B, 4F, S).
    w1: (F, 4F), b1: (F,), w2: (F//2, F), b2: (F//2,)  -- PyTorch Linear layout.
    Returns (B, S, F//2)."""
    B, C_in, S = conv_embed.shape            # C_in = 4*F
    F1 = w1.shape[0]                         # F
    F2 = w2.shape[0]                         # F // 2
    itemsize = jnp.dtype(conv_embed.dtype).itemsize

    s_tile, S_pad = _pick_seq_tile(S, C_in, F2, itemsize, target=seq_tile)
    if S_pad != S:
        conv_embed = jnp.pad(conv_embed, ((0, 0), (0, 0), (0, S_pad - S)))
    grid = (B, S_pad // s_tile)

    # Tiny one-time reshapes only (biases -> column vectors). Weights stay in
    # their native (out, in) layout -> no transposes at all.
    b1c = b1.reshape(F1, 1)
    b2c = b2.reshape(F2, 1)

    flops = 2 * B * S_pad * (C_in * F1 + F1 * F2)
    bytes_accessed = (
        B * C_in * S_pad * itemsize
        + (F1 * C_in + F1 + F2 * F1 + F2) * jnp.dtype(w1.dtype).itemsize
        + B * F2 * S_pad * itemsize)

    out = pl.pallas_call(
        _fnn_kernel,
        out_shape=jax.ShapeDtypeStruct((B, F2, S_pad), conv_embed.dtype),
        grid_spec=pltpu.PrefetchScalarGridSpec(
            num_scalar_prefetch=0,
            grid=grid,
            in_specs=[
                # x: one batch element, full feature axis, a tile of timesteps.
                pl.BlockSpec((None, C_in, s_tile), lambda b, s: (b, 0, s)),
                # Weights/biases: constant block index -> VMEM-resident.
                pl.BlockSpec((F1, C_in), lambda b, s: (0, 0)),
                pl.BlockSpec((F1, 1), lambda b, s: (0, 0)),
                pl.BlockSpec((F2, F1), lambda b, s: (0, 0)),
                pl.BlockSpec((F2, 1), lambda b, s: (0, 0)),
            ],
            # Lane-dense output block: last dim is s_tile (multiple of 128, or
            # the whole S for short sequences).
            out_specs=pl.BlockSpec((None, F2, s_tile), lambda b, s: (b, 0, s)),
        ),
        compiler_params=pltpu.CompilerParams(
            dimension_semantics=("parallel", "parallel"),
            vmem_limit_bytes=32 * 1024 * 1024),
        cost_estimate=pl.CostEstimate(
            flops=flops, transcendentals=0, bytes_accessed=bytes_accessed),
    )(conv_embed, w1, b1c, w2, b2c)

    # Restore the module's (B, S, F//2) layout; output is the smallest tensor
    # here so this XLA transpose is cheap compared to padded in-kernel stores.
    out = out[:, :, :S]
    return jnp.transpose(out, (0, 2, 1))


def _reference(conv_embed, w1, b1, w2, b2):
    x = jnp.transpose(conv_embed, (0, 2, 1))          # (B, S, 4F)
    h = jnp.maximum(jnp.einsum('bsi,oi->bso', x, w1) + b1, 0.0)
    y = jnp.maximum(jnp.einsum('bsi,oi->bso', h, w2) + b2, 0.0)
    return y


if __name__ == "__main__":
    # config['cnn_features'] = 32  => in=128, hidden=32, out=16
    F = 32
    B, S = 2, 8
    key = jax.random.PRNGKey(0)
    k1, k2, k3, k4, k5 = jax.random.split(key, 5)

    conv_embed = jax.random.normal(k1, (B, 4 * F, S), dtype=jnp.float32)
    # PyTorch Linear parameter shapes: (out, in)
    w1 = jax.random.normal(k2, (F, 4 * F), dtype=jnp.float32) * 0.05
    b1 = jax.random.normal(k3, (F,), dtype=jnp.float32) * 0.05
    w2 = jax.random.normal(k4, (F // 2, F), dtype=jnp.float32) * 0.05
    b2 = jax.random.normal(k5, (F // 2,), dtype=jnp.float32) * 0.05

    out = sequential_fnn(conv_embed, w1, b1, w2, b2)
    out = jax.block_until_ready(out)

    ref = _reference(conv_embed, w1, b1, w2, b2)
    assert out.shape == (B, S, F // 2), out.shape
    assert jnp.allclose(out, ref, atol=1e-5, rtol=1e-5), \
        float(jnp.max(jnp.abs(out - ref)))

    print("KERNEL_OK")
</pallas_src>

<mosaic_0001>
module attributes {stable_mosaic.version = 11 : i64} {
  func.func @_fnn_kernel(%arg0: i32, %arg1: i32, %arg2: memref<1x128x8xf32, #tpu.memory_space<vmem>>, %arg3: memref<32x128xf32, #tpu.memory_space<vmem>>, %arg4: memref<32x1xf32, #tpu.memory_space<vmem>>, %arg5: memref<16x32xf32, #tpu.memory_space<vmem>>, %arg6: memref<16x1xf32, #tpu.memory_space<vmem>>, %arg7: memref<1x16x8xf32, #tpu.memory_space<vmem>>) attributes {dimension_semantics = [#tpu.dimension_semantics<parallel>, #tpu.dimension_semantics<parallel>], iteration_bounds = array<i64: 2, 1>, scalar_prefetch = 0 : i64, scratch_operands = 0 : i64, tpu.core_type = #tpu.core_type<tc>, window_params = [{transform_indices = @transform_0, window_bounds = array<i64: 1, 128, 8>}, {pipeline_mode = #tpu.pipeline_mode<synchronous>, transform_indices = @transform_1, window_bounds = array<i64: 32, 128>}, {pipeline_mode = #tpu.pipeline_mode<synchronous>, transform_indices = @transform_2, window_bounds = array<i64: 32, 1>}, {pipeline_mode = #tpu.pipeline_mode<synchronous>, transform_indices = @transform_3, window_bounds = array<i64: 16, 32>}, {pipeline_mode = #tpu.pipeline_mode<synchronous>, transform_indices = @transform_4, window_bounds = array<i64: 16, 1>}, {transform_indices = @transform_5, window_bounds = array<i64: 1, 16, 8>}]} {
    %c0 = arith.constant 0 : index
    %c0_0 = arith.constant 0 : index
    %0 = vector.load %arg3[%c0, %c0_0] : memref<32x128xf32, #tpu.memory_space<vmem>>, vector<32x128xf32>
    %c0_1 = arith.constant 0 : index
    %c0_2 = arith.constant 0 : index
    %c0_3 = arith.constant 0 : index
    %1 = vector.load %arg2[%c0_1, %c0_2, %c0_3] : memref<1x128x8xf32, #tpu.memory_space<vmem>>, vector<1x128x8xf32>
    %2 = vector.shape_cast %1 : vector<1x128x8xf32> to vector<128x8xf32>
    %cst = arith.constant dense<0.000000e+00> : vector<32x8xf32>
    %3 = tpu.matmul %0, %2, %cst {dimension_numbers = #tpu.dot_dimension_numbers<[1], [0], [0], [1], [0, 0, 1, 1], [], []>} : vector<32x128xf32>, vector<128x8xf32>, vector<32x8xf32> -> vector<32x8xf32>
    %c0_4 = arith.constant 0 : index
    %c0_5 = arith.constant 0 : index
    %4 = vector.load %arg4[%c0_4, %c0_5] : memref<32x1xf32, #tpu.memory_space<vmem>>, vector<32x1xf32>
    %5 = vector.broadcast %4 : vector<32x1xf32> to vector<32x8xf32>
    %6 = arith.addf %3, %5 : vector<32x8xf32>
    %cst_6 = arith.constant 0.000000e+00 : f32
    %7 = vector.broadcast %cst_6 : f32 to vector<32x8xf32>
    %8 = arith.maximumf %6, %7 : vector<32x8xf32>
    %c0_7 = arith.constant 0 : index
    %c0_8 = arith.constant 0 : index
    %9 = vector.load %arg5[%c0_7, %c0_8] : memref<16x32xf32, #tpu.memory_space<vmem>>, vector<16x32xf32>
    %cst_9 = arith.constant dense<0.000000e+00> : vector<16x8xf32>
    %10 = tpu.matmul %9, %8, %cst_9 {dimension_numbers = #tpu.dot_dimension_numbers<[1], [0], [0], [1], [0, 0, 1, 1], [], []>} : vector<16x32xf32>, vector<32x8xf32>, vector<16x8xf32> -> vector<16x8xf32>
    %c0_10 = arith.constant 0 : index
    %c0_11 = arith.constant 0 : index
    %11 = vector.load %arg6[%c0_10, %c0_11] : memref<16x1xf32, #tpu.memory_space<vmem>>, vector<16x1xf32>
    %12 = vector.broadcast %11 : vector<16x1xf32> to vector<16x8xf32>
    %13 = arith.addf %10, %12 : vector<16x8xf32>
    %cst_12 = arith.constant 0.000000e+00 : f32
    %14 = vector.broadcast %cst_12 : f32 to vector<16x8xf32>
    %15 = arith.maximumf %13, %14 : vector<16x8xf32>
    %c0_13 = arith.constant 0 : index
    %c0_14 = arith.constant 0 : index
    %c0_15 = arith.constant 0 : index
    %16 = vector.load %arg7[%c0_13, %c0_14, %c0_15] : memref<1x16x8xf32, #tpu.memory_space<vmem>>, vector<1x16x8xf32>
    %17 = vector.shape_cast %16 : vector<1x16x8xf32> to vector<16x8xf32>
    %18 = vector.shape_cast %15 : vector<16x8xf32> to vector<1x16x8xf32>
    tpu.vector_store %arg7[%c0_13, %c0_14, %c0_15], %18 {strides = array<i32>} : memref<1x16x8xf32, #tpu.memory_space<vmem>>, vector<1x16x8xf32>,
    return
  }
  func.func @transform_0(%arg0: i32, %arg1: i32) -> (i32, i32, i32) {
    %c0_i32 = arith.constant 0 : i32
    %c0_i32_0 = arith.constant 0 : i32
    return %arg0, %c0_i32, %arg1 : i32, i32, i32
  }
  func.func @transform_1(%arg0: i32, %arg1: i32) -> (i32, i32) {
    %c0_i32 = arith.constant 0 : i32
    %c0_i32_0 = arith.constant 0 : i32
    %c0_i32_1 = arith.constant 0 : i32
    return %c0_i32, %c0_i32_0 : i32, i32
  }
  func.func @transform_2(%arg0: i32, %arg1: i32) -> (i32, i32) {
    %c0_i32 = arith.constant 0 : i32
    %c0_i32_0 = arith.constant 0 : i32
    %c0_i32_1 = arith.constant 0 : i32
    return %c0_i32, %c0_i32_0 : i32, i32
  }
  func.func @transform_3(%arg0: i32, %arg1: i32) -> (i32, i32) {
    %c0_i32 = arith.constant 0 : i32
    %c0_i32_0 = arith.constant 0 : i32
    %c0_i32_1 = arith.constant 0 : i32
    return %c0_i32, %c0_i32_0 : i32, i32
  }
  func.func @transform_4(%arg0: i32, %arg1: i32) -> (i32, i32) {
    %c0_i32 = arith.constant 0 : i32
    %c0_i32_0 = arith.constant 0 : i32
    %c0_i32_1 = arith.constant 0 : i32
    return %c0_i32, %c0_i32_0 : i32, i32
  }
  func.func @transform_5(%arg0: i32, %arg1: i32) -> (i32, i32, i32) {
    %c0_i32 = arith.constant 0 : i32
    %c0_i32_0 = arith.constant 0 : i32
    return %arg0, %c0_i32, %arg1 : i32, i32, i32
  }
}

</mosaic_0001>

<llo_original>
// kernel: tpu_custom_call.1
$region0: #{tpu_custom_call.1}
  #allocation0 [shape = 'u32[]', space=smem, size = 0x4, offset = 0x4, fixed_abs, tag = 'smem constant byte address 0x4 - core index']
  #allocation1 [shape = 'u32[144,128]{1,0:T(1,128)}', space=vmem, size = 0x12000, scoped, tag = 'internal scratch']
  %s0 = inlined_call_operand.vmem [shape: f32[2,128,8], index: 0, kind: input, shape index: {}]
  %s1 = inlined_call_operand.vmem [shape: f32[32,128], index: 1, kind: input, shape index: {}]
  %s2 = inlined_call_operand.vmem [shape: f32[32,1], index: 2, kind: input, shape index: {}]
  %s3 = inlined_call_operand.vmem [shape: f32[16,32], index: 3, kind: input, shape index: {}]
  %s4 = inlined_call_operand.vmem [shape: f32[16,1], index: 4, kind: input, shape index: {}]
  %s5 = inlined_call_operand.vmem [shape: f32[2,16,8], index: 5, kind: output, shape index: {}]
  %s6 = sld [smem:[#allocation0]]
  $region53: #{tpu_custom_call.1} parent=0
    _
  %s8 = ssub.s32 1, %s6
  %s9 = scalar_select 0, %s8, %s6
  loop: start=0, step=1, limit=4
  $region2: #{tpu_custom_call.1} parent=0 // loop_pre_header
    _
  $region3: #{tpu_custom_call.1} parent=0 // loop_header
    %s11 = sphi 0, %s15
    %p12 = scmp.ge.s32.totalorder %s11, 4
    %s18 = sphi 0, %s30
    %s19 = sphi 0, %s26
    %s20 = sphi 0, %s18
    %s21 = sphi 0, %s19
    %s22 = sphi 0, %s20
    %s23 = sphi 0, %s21
    %s35 = sphi 0, %s37
    %s38 = sphi 0, %s35
    %s39 = sphi 0, %s38
    %s55 = sphi 0, %s39
    %s59 = sphi 0, %s59
    %s61 = sphi 0, %s59
    %s62 = sphi 0, %s61
    %s76 = sphi 0, %s62
    %s80 = sphi 0, %s80
    %s82 = sphi 0, %s80
    %s83 = sphi 0, %s82
    %s97 = sphi 0, %s83
    %s101 = sphi 0, %s101
    %s103 = sphi 0, %s101
    %s104 = sphi 0, %s103
    %s118 = sphi 0, %s104
    %s122 = sphi 0, %s122
    %s124 = sphi 0, %s122
    %s125 = sphi 0, %s124
    %s139 = sphi 0, %s125
    %s147 = sphi 0, %s149
    %s150 = sphi 0, %s147
    %s151 = sphi 0, %s150
    %s167 = sphi 0, %s151
  $region4: #{tpu_custom_call.1} parent=0 // loop_header_branch
    %14 = sbr.rel (%p12) target = $region8
  $region5: #{tpu_custom_call.1} parent=0 // loop_body
    %s16 = ssub.s32 %s11, 1
    %s17 = ssub.s32 %s11, 2
    %s24 = sadd.s32 1, %s19
    %p25 = scmp.ge.s32.totalorder %s24, 1
    %s26 = scalar_select %p25, 0, %s24
    %s27 = sadd.s32 1, %s18
    %s28 = scalar_select %p25, %s27, %s18
    %p29 = scmp.ge.s32.totalorder %s28, 2
    %s30 = scalar_select %p29, 0, %s28
    %s31 = ssub.s32 %s18, %s30
    %s32 = ssub.s32 %s19, %s26
    %s33 = sor.u32 %s31, %s32
    %p34 = scmp.eq.s32.totalorder %s33, 0
    %s36 = sadd.s32 %s35, 1
    %s37 = scalar_select %p34, %s35, %s36
    %p40 = pneg %p34
    %p41 = scmp.eq.s32.totalorder %s11, 1
    %p42 = por %p40, %p41
    %p43 = scmp.ne.s32.totalorder %s35, %s38
    %p44 = scmp.eq.s32.totalorder %s11, 0
    %p45 = por %p43, %p44
    %p46 = scmp.ne.s32.totalorder %s35, %s38
    %p47 = scmp.eq.s32.totalorder %s16, 1
    %p48 = por %p46, %p47
    %p49 = scmp.ne.s32.totalorder %s38, %s39
    %p50 = scmp.eq.s32.totalorder %s16, 0
    %p51 = por %p49, %p50
    %p52 = scmp.ne.s32.totalorder %s38, %s39
    %p53 = scmp.eq.s32.totalorder %s17, 1
    %p54 = por %p52, %p53
    %p56 = scmp.ne.s32.totalorder %s39, %s55
    %p57 = scmp.eq.s32.totalorder %s17, 0
    %p58 = por %p56, %p57
    %s60 = sadd.s32 %s59, 1
    %p63 = scmp.eq.s32.totalorder %s11, 1
    %p64 = scmp.ne.s32.totalorder %s59, %s61
    %p65 = scmp.eq.s32.totalorder %s11, 0
    %p66 = por %p64, %p65
    %p67 = scmp.ne.s32.totalorder %s59, %s61
    %p68 = scmp.eq.s32.totalorder %s16, 1
    %p69 = por %p67, %p68
    %p70 = scmp.ne.s32.totalorder %s61, %s62
    %p71 = scmp.eq.s32.totalorder %s16, 0
    %p72 = por %p70, %p71
    %p73 = scmp.ne.s32.totalorder %s61, %s62
    %p74 = scmp.eq.s32.totalorder %s17, 1
    %p75 = por %p73, %p74
    %p77 = scmp.ne.s32.totalorder %s62, %s76
    %p78 = scmp.eq.s32.totalorder %s17, 0
    %p79 = por %p77, %p78
    %s81 = sadd.s32 %s80, 1
    %p84 = scmp.eq.s32.totalorder %s11, 1
    %p85 = scmp.ne.s32.totalorder %s80, %s82
    %p86 = scmp.eq.s32.totalorder %s11, 0
    %p87 = por %p85, %p86
    %p88 = scmp.ne.s32.totalorder %s80, %s82
    %p89 = scmp.eq.s32.totalorder %s16, 1
    %p90 = por %p88, %p89
    %p91 = scmp.ne.s32.totalorder %s82, %s83
    %p92 = scmp.eq.s32.totalorder %s16, 0
    %p93 = por %p91, %p92
    %p94 = scmp.ne.s32.totalorder %s82, %s83
    %p95 = scmp.eq.s32.totalorder %s17, 1
    %p96 = por %p94, %p95
    %p98 = scmp.ne.s32.totalorder %s83, %s97
    %p99 = scmp.eq.s32.totalorder %s17, 0
    %p100 = por %p98, %p99
    %s102 = sadd.s32 %s101, 1
    %p105 = scmp.eq.s32.totalorder %s11, 1
    %p106 = scmp.ne.s32.totalorder %s101, %s103
    %p107 = scmp.eq.s32.totalorder %s11, 0
    %p108 = por %p106, %p107
    %p109 = scmp.ne.s32.totalorder %s101, %s103
    %p110 = scmp.eq.s32.totalorder %s16, 1
    %p111 = por %p109, %p110
    %p112 = scmp.ne.s32.totalorder %s103, %s104
    %p113 = scmp.eq.s32.totalorder %s16, 0
    %p114 = por %p112, %p113
    %p115 = scmp.ne.s32.totalorder %s103, %s104
    %p116 = scmp.eq.s32.totalorder %s17, 1
    %p117 = por %p115, %p116
    %p119 = scmp.ne.s32.totalorder %s104, %s118
    %p120 = scmp.eq.s32.totalorder %s17, 0
    %p121 = por %p119, %p120
    %s123 = sadd.s32 %s122, 1
    %p126 = scmp.eq.s32.totalorder %s11, 1
    %p127 = scmp.ne.s32.totalorder %s122, %s124
    %p128 = scmp.eq.s32.totalorder %s11, 0
    %p129 = por %p127, %p128
    %p130 = scmp.ne.s32.totalorder %s122, %s124
    %p131 = scmp.eq.s32.totalorder %s16, 1
    %p132 = por %p130, %p131
    %p133 = scmp.ne.s32.totalorder %s124, %s125
    %p134 = scmp.eq.s32.totalorder %s16, 0
    %p135 = por %p133, %p134
    %p136 = scmp.ne.s32.totalorder %s124, %s125
    %p137 = scmp.eq.s32.totalorder %s17, 1
    %p138 = por %p136, %p137
    %p140 = scmp.ne.s32.totalorder %s125, %s139
    %p141 = scmp.eq.s32.totalorder %s17, 0
    %p142 = por %p140, %p141
    %s143 = ssub.s32 %s18, %s30
    %s144 = ssub.s32 %s19, %s26
    %s145 = sor.u32 %s143, %s144
    %p146 = scmp.eq.s32.totalorder %s145, 0
    %s148 = sadd.s32 %s147, 1
    %s149 = scalar_select %p146, %s147, %s148
    %p152 = pneg %p146
    %p153 = scmp.eq.s32.totalorder %s11, 1
    %p154 = por %p152, %p153
    %p155 = scmp.ne.s32.totalorder %s147, %s150
    %p156 = scmp.eq.s32.totalorder %s11, 0
    %p157 = por %p155, %p156
    %p158 = scmp.ne.s32.totalorder %s147, %s150
    %p159 = scmp.eq.s32.totalorder %s16, 1
    %p160 = por %p158, %p159
    %p161 = scmp.ne.s32.totalorder %s150, %s151
    %p162 = scmp.eq.s32.totalorder %s16, 0
    %p163 = por %p161, %p162
    %p164 = scmp.ne.s32.totalorder %s150, %s151
    %p165 = scmp.eq.s32.totalorder %s17, 1
    %p166 = por %p164, %p165
    %p168 = scmp.ne.s32.totalorder %s151, %s167
    %p169 = scmp.eq.s32.totalorder %s17, 0
    %p170 = por %p168, %p169
    %p171 = scmp.le.s32.totalorder 1, %s11
    %p172 = scmp.lt.s32.totalorder %s11, 3
    %p173 = pnand %p171, %p172
    %p174 = pneg %p173
    // Predicated region
    $region9: #{tpu_custom_call.1} parent=5 // pred_check
      _
    $region10: #{tpu_custom_call.1} parent=5 // pred_check_branch
      %176 = sbr.rel (%p173) target = $region12
    $region11: #{tpu_custom_call.1} parent=5 // pred_region
      %s177 = ssub.s32 %s11, 1
      // Predicated region
      $region13: #{tpu_custom_call.1} parent=11 // pred_check
        %p178 = pneg %p72
      $region14: #{tpu_custom_call.1} parent=11 // pred_check_branch
        %180 = sbr.rel (%p178) target = $region16
      $region15: #{tpu_custom_call.1} parent=11 // pred_region
        _
      $region16: #{tpu_custom_call.1} parent=11 // pred_fallthru
        _
      // Predicated region
      $region17: #{tpu_custom_call.1} parent=11 // pred_check
        %p181 = pneg %p93
      $region18: #{tpu_custom_call.1} parent=11 // pred_check_branch
        %183 = sbr.rel (%p181) target = $region20
      $region19: #{tpu_custom_call.1} parent=11 // pred_region
        _
      $region20: #{tpu_custom_call.1} parent=11 // pred_fallthru
        _
      // Predicated region
      $region21: #{tpu_custom_call.1} parent=11 // pred_check
        %p184 = pneg %p114
      $region22: #{tpu_custom_call.1} parent=11 // pred_check_branch
        %186 = sbr.rel (%p184) target = $region24
      $region23: #{tpu_custom_call.1} parent=11 // pred_region
        _
      $region24: #{tpu_custom_call.1} parent=11 // pred_fallthru
        _
      // Predicated region
      $region25: #{tpu_custom_call.1} parent=11 // pred_check
        %p187 = pneg %p135
      $region26: #{tpu_custom_call.1} parent=11 // pred_check_branch
        %189 = sbr.rel (%p187) target = $region28
      $region27: #{tpu_custom_call.1} parent=11 // pred_region
        _
      $region28: #{tpu_custom_call.1} parent=11 // pred_fallthru
        _
    $region12: #{tpu_custom_call.1} parent=5 // pred_fallthru
      _
    %p190 = scmp.lt.s32.totalorder %s11, 2
    // Predicated region
    $region29: #{tpu_custom_call.1} parent=5 // pred_check
      %p191 = pneg %p190
    $region30: #{tpu_custom_call.1} parent=5 // pred_check_branch
      %193 = sbr.rel (%p191) target = $region32
    $region31: #{tpu_custom_call.1} parent=5 // pred_region
      // Predicated region
      $region33: #{tpu_custom_call.1} parent=31 // pred_check
        %p194 = pneg %p45
      $region34: #{tpu_custom_call.1} parent=31 // pred_check_branch
        %196 = sbr.rel (%p194) target = $region36
      $region35: #{tpu_custom_call.1} parent=31 // pred_region
        %p197 = scmp.lt.s32.totalorder %s18, 1
        %s198 = scalar_select %p197, %s18, 1
        %p199 = scmp.lt.s32.totalorder %s19, 0
        %s200 = scalar_select %p199, %s19, 0
        %s201 = smul.addr %s198, 16
        %s202 = sadd.s32 %s200, %s201
        %s203 = smul.addr %s202, 8
        %s204 = scalar_lea.vmem %s0, %s203
      $region36: #{tpu_custom_call.1} parent=31 // pred_fallthru
        _
    $region32: #{tpu_custom_call.1} parent=5 // pred_fallthru
      _
    %p205 = scmp.le.s32.totalorder 1, %s11
    %p206 = scmp.lt.s32.totalorder %s11, 3
    %p207 = pnand %p205, %p206
    %p208 = pneg %p207
    // Predicated region
    $region37: #{tpu_custom_call.1} parent=5 // pred_check
      _
    $region38: #{tpu_custom_call.1} parent=5 // pred_check_branch
      %210 = sbr.rel (%p207) target = $region40
    $region39: #{tpu_custom_call.1} parent=5 // pred_region
      %s211 = ssub.s32 %s11, 1
      %p212 = scmp.lt.s32.totalorder %s20, 1
      %s213 = scalar_select %p212, %s20, 1
      %p214 = scmp.lt.s32.totalorder %s21, 0
      %s215 = scalar_select %p214, %s21, 0
      %s216 = smul.addr %s213, 16
      %s217 = sadd.s32 %s215, %s216
      %s218 = smul.addr %s217, 8
      %s219 = scalar_lea.vmem %s0, %s218
      %p220 = pneg %p51
      %p221 = pneg %p48
      %p222 = pneg %p72
      %p223 = pneg %p69
      %p224 = pneg %p93
      %p225 = pneg %p90
      %p226 = pneg %p114
      %p227 = pneg %p111
      %p228 = pneg %p135
      %p229 = pneg %p132
      %p230 = pneg %p163
      %p231 = pneg %p160
      %p232 = scmp.lt.s32.totalorder %s20, 1
      %s233 = scalar_select %p232, %s20, 1
      %p234 = scmp.lt.s32.totalorder %s21, 0
      %s235 = scalar_select %p234, %s21, 0
      %s236 = smul.addr %s233, 2
      %s237 = sadd.s32 %s235, %s236
      %s238 = smul.addr %s237, 8
      %s239 = scalar_lea.vmem %s5, %s238
      %p240 = scmp.lt.s32.totalorder %s20, 1
      %s241 = scalar_select %p240, %s20, 1
      %p242 = scmp.lt.s32.totalorder %s21, 0
      %s243 = scalar_select %p242, %s21, 0
      %s244 = smul.addr %s241, 16
      %s245 = sadd.s32 %s243, %s244
      %s246 = smul.addr %s245, 8
      %s247 = scalar_lea.vmem %s0, %s246
      %p248 = scmp.lt.s32.totalorder %s20, 1
      %s249 = scalar_select %p248, %s20, 1
      %p250 = scmp.lt.s32.totalorder %s21, 0
      %s251 = scalar_select %p250, %s21, 0
      %s252 = smul.addr %s249, 2
      %s253 = sadd.s32 %s251, %s252
      %s254 = smul.addr %s253, 8
      %s255 = scalar_lea.vmem %s5, %s254
      %v256 = vld [vmem:[%s1] sm:$0xff]
      %v257 = vld [vmem:[%s1 + $0x8] sm:$0xff]
      %v258 = vld [vmem:[%s1 + $0x10] sm:$0xff]
      %v259 = vld [vmem:[%s1 + $0x18] sm:$0xff]
      %v260 = vld [vmem:[%s247] sm:$0xff]
      %v261 = vld [vmem:[%s247 + $0x8] sm:$0xff]
      %v262 = vld [vmem:[%s247 + $0x10] sm:$0xff]
      %v263 = vld [vmem:[%s247 + $0x18] sm:$0xff]
      %v264 = vld [vmem:[%s247 + $0x20] sm:$0xff]
      %v265 = vld [vmem:[%s247 + $0x28] sm:$0xff]
      %v266 = vld [vmem:[%s247 + $0x30] sm:$0xff]
      %v267 = vld [vmem:[%s247 + $0x38] sm:$0xff]
      %v268 = vld [vmem:[%s247 + $0x40] sm:$0xff]
      %v269 = vld [vmem:[%s247 + $0x48] sm:$0xff]
      %v270 = vld [vmem:[%s247 + $0x50] sm:$0xff]
      %v271 = vld [vmem:[%s247 + $0x58] sm:$0xff]
      %v272 = vld [vmem:[%s247 + $0x60] sm:$0xff]
      %v273 = vld [vmem:[%s247 + $0x68] sm:$0xff]
      %v274 = vld [vmem:[%s247 + $0x70] sm:$0xff]
      %v275 = vld [vmem:[%s247 + $0x78] sm:$0xff]
      %v276 = vld [vmem:[%s2] sm:$0xff]
      %v277 = vld [vmem:[%s2 + $0x8] sm:$0xff]
      %v278 = vld [vmem:[%s2 + $0x10] sm:$0xff]
      %v279 = vld [vmem:[%s2 + $0x18] sm:$0xff]
      %281 = vset.pattern.permute.xlu0 0
      %282 = vperm.xlu0 %281, %v276
      %v283 = vpop.permute.xlu0 %282
      %286 = vset.pattern.permute.xlu0 0
      %287 = vperm.xlu0 %286, %v277
      %v288 = vpop.permute.xlu0 %287
      %291 = vset.pattern.permute.xlu0 0
      %292 = vperm.xlu0 %291, %v278
      %v293 = vpop.permute.xlu0 %292
      %296 = vset.pattern.permute.xlu0 0
      %297 = vperm.xlu0 %296, %v279
      %v298 = vpop.permute.xlu0 %297
      %300 = vmatprep.subr.mxu0 0.0
      %301 = vmatpush1.msra.mxu0 %v260
      %302 = vmatprep.subr.mxu0 0.0
      %303 = vmatpush1.msra.mxu0 %v261
      %304 = vmatprep.subr.mxu0 0.0
      %305 = vmatpush1.msra.mxu0 %v262
      %306 = vmatprep.subr.mxu0 0.0
      %307 = vmatpush1.msra.mxu0 %v263
      %308 = vmatprep.subr.mxu0 0.0
      %309 = vmatpush1.msra.mxu0 %v264
      %310 = vmatprep.subr.mxu0 0.0
      %311 = vmatpush1.msra.mxu0 %v265
      %312 = vmatprep.subr.mxu0 0.0
      %313 = vmatpush1.msra.mxu0 %v266
      %314 = vmatprep.subr.mxu0 0.0
      %315 = vmatpush1.msra.mxu0 %v267
      %316 = vmatprep.subr.mxu0 0.0
      %317 = vmatpush1.msra.mxu0 %v268
      %318 = vmatprep.subr.mxu0 0.0
      %319 = vmatpush1.msra.mxu0 %v269
      %320 = vmatprep.subr.mxu0 0.0
      %321 = vmatpush1.msra.mxu0 %v270
      %322 = vmatprep.subr.mxu0 0.0
      %323 = vmatpush1.msra.mxu0 %v271
      %324 = vmatprep.subr.mxu0 0.0
      %325 = vmatpush1.msra.mxu0 %v272
      %326 = vmatprep.subr.mxu0 0.0
      %327 = vmatpush1.msra.mxu0 %v273
      %328 = vmatprep.subr.mxu0 0.0
      %329 = vmatpush1.msra.mxu0 %v274
      %330 = vmatprep.subr.mxu0 0.0
      %331 = vmatpush1.msra.mxu0 %v275
      %332 = vmatprep.subr.mxu0 0.0
      %333 = vmatpush1.msra.mxu0 0.0
      %334 = vmatprep.subr.mxu0 0.0
      %335 = vmatpush1.msra.mxu0 0.0
      %336 = vmatprep.subr.mxu0 0.0
      %337 = vmatpush1.msra.mxu0 0.0
      %338 = vmatprep.subr.mxu0 0.0
      %339 = vmatpush1.msra.mxu0 0.0
      %340 = vmatprep.subr.mxu0 0.0
      %341 = vmatpush1.msra.mxu0 0.0
      %342 = vmatprep.subr.mxu0 0.0
      %343 = vmatpush1.msra.mxu0 0.0
      %344 = vmatprep.subr.mxu0 0.0
      %345 = vmatpush1.msra.mxu0 0.0
      %346 = vmatprep.subr.mxu0 0.0
      %347 = vmatpush1.msra.mxu0 0.0
      %348 = vmatprep.subr.mxu0 0.0
      %349 = vmatpush1.msra.mxu0 0.0
      %350 = vmatprep.subr.mxu0 0.0
      %351 = vmatpush1.msra.mxu0 0.0
      %352 = vmatprep.subr.mxu0 0.0
      %353 = vmatpush1.msra.mxu0 0.0
      %354 = vmatprep.subr.mxu0 0.0
      %355 = vmatpush1.msra.mxu0 0.0
      %356 = vmatprep.subr.mxu0 0.0
      %357 = vmatpush1.msra.mxu0 0.0
      %358 = vmatprep.subr.mxu0 0.0
      %359 = vmatpush1.msra.mxu0 0.0
      %360 = vmatprep.subr.mxu0 0.0
      %361 = vmatpush1.msra.mxu0 0.0
      %362 = vmatprep.subr.mxu0 0.0
      %363 = vmatpush1.msra.mxu0 0.0
      %364 = vmatprep.mubr.f32.mxu0 0.0
      %365 = vmatmul.mubr.f32.gmra.mrb[0].mxu0 %v256
      %v366 = vpop.f32.mrb[0].mxu0
      %v367 = vadd.f32 %v283, %v366
      %v368 = vpop.f32.mrb[0].mxu0
      %369 = vmatprep.mubr.f32.mxu0 0.0
      %370 = vmatmul.mubr.f32.gmra.mrb[0].mxu0 %v257
      %v371 = vpop.f32.mrb[0].mxu0
      %v372 = vadd.f32 %v288, %v371
      %v373 = vpop.f32.mrb[0].mxu0
      %374 = vmatprep.mubr.f32.mxu0 0.0
      %375 = vmatmul.mubr.f32.gmra.mrb[0].mxu0 %v258
      %v376 = vpop.f32.mrb[0].mxu0
      %v377 = vadd.f32 %v293, %v376
      %v378 = vpop.f32.mrb[0].mxu0
      %379 = vmatprep.mubr.f32.mxu0 0.0
      %380 = vmatmul.mubr.f32.gmra.mrb[0].mxu0 %v259
      %v381 = vpop.f32.mrb[0].mxu0
      %v382 = vadd.f32 %v298, %v381
      %v383 = vpop.f32.mrb[0].mxu0
      %384 = vdwg.mxu0
      %v385 = vmax.f32 %v367, 0.0
      %v386 = vmax.f32 %v372, 0.0
      %v387 = vmax.f32 %v377, 0.0
      %v388 = vmax.f32 %v382, 0.0
      %v389 = vld [vmem:[%s3] sm:$0xff]
      %v390 = vld [vmem:[%s3 + $0x8] sm:$0xff]
      %v391 = vld [vmem:[%s4] sm:$0xff]
      %v392 = vld [vmem:[%s4 + $0x8] sm:$0xff]
      %394 = vset.pattern.permute.xlu0 0
      %395 = vperm.xlu0 %394, %v391
      %v396 = vpop.permute.xlu0 %395
      %399 = vset.pattern.permute.xlu0 0
      %400 = vperm.xlu0 %399, %v392
      %v401 = vpop.permute.xlu0 %400
      %vm403 = vcmask 261120
      %v405 = vsel %vm403, %v389, 0
      %v408 = vsel %vm403, %v390, 0
      %410 = vmatprep.subr.mxu0 0.0
      %411 = vmatpush1.msra.mxu0 %v385
      %412 = vmatprep.subr.mxu0 0.0
      %413 = vmatpush1.msra.mxu0 %v386
      %414 = vmatprep.subr.mxu0 0.0
      %415 = vmatpush1.msra.mxu0 %v387
      %416 = vmatprep.subr.mxu0 0.0
      %417 = vmatpush1.msra.mxu0 %v388
      %418 = vmatprep.subr.mxu0 0.0
      %419 = vmatpush1.msra.mxu0 0.0
      %420 = vmatprep.subr.mxu0 0.0
      %421 = vmatpush1.msra.mxu0 0.0
      %422 = vmatprep.subr.mxu0 0.0
      %423 = vmatpush1.msra.mxu0 0.0
      %424 = vmatprep.subr.mxu0 0.0
      %425 = vmatpush1.msra.mxu0 0.0
      %426 = vmatprep.subr.mxu0 0.0
      %427 = vmatpush1.msra.mxu0 0.0
      %428 = vmatprep.subr.mxu0 0.0
      %429 = vmatpush1.msra.mxu0 0.0
      %430 = vmatprep.subr.mxu0 0.0
      %431 = vmatpush1.msra.mxu0 0.0
      %432 = vmatprep.subr.mxu0 0.0
      %433 = vmatpush1.msra.mxu0 0.0
      %434 = vmatprep.subr.mxu0 0.0
      %435 = vmatpush1.msra.mxu0 0.0
      %436 = vmatprep.subr.mxu0 0.0
      %437 = vmatpush1.msra.mxu0 0.0
      %438 = vmatprep.subr.mxu0 0.0
      %439 = vmatpush1.msra.mxu0 0.0
      %440 = vmatprep.subr.mxu0 0.0
      %441 = vmatpush1.msra.mxu0 0.0
      %442 = vmatprep.subr.mxu0 0.0
      %443 = vmatpush1.msra.mxu0 0.0
      %444 = vmatprep.subr.mxu0 0.0
      %445 = vmatpush1.msra.mxu0 0.0
      %446 = vmatprep.subr.mxu0 0.0
      %447 = vmatpush1.msra.mxu0 0.0
      %448 = vmatprep.subr.mxu0 0.0
      %449 = vmatpush1.msra.mxu0 0.0
      %450 = vmatprep.subr.mxu0 0.0
      %451 = vmatpush1.msra.mxu0 0.0
      %452 = vmatprep.subr.mxu0 0.0
      %453 = vmatpush1.msra.mxu0 0.0
      %454 = vmatprep.subr.mxu0 0.0
      %455 = vmatpush1.msra.mxu0 0.0
      %456 = vmatprep.subr.mxu0 0.0
      %457 = vmatpush1.msra.mxu0 0.0
      %458 = vmatprep.subr.mxu0 0.0
      %459 = vmatpush1.msra.mxu0 0.0
      %460 = vmatprep.subr.mxu0 0.0
      %461 = vmatpush1.msra.mxu0 0.0
      %462 = vmatprep.subr.mxu0 0.0
      %463 = vmatpush1.msra.mxu0 0.0
      %464 = vmatprep.subr.mxu0 0.0
      %465 = vmatpush1.msra.mxu0 0.0
      %466 = vmatprep.subr.mxu0 0.0
      %467 = vmatpush1.msra.mxu0 0.0
      %468 = vmatprep.subr.mxu0 0.0
      %469 = vmatpush1.msra.mxu0 0.0
      %470 = vmatprep.subr.mxu0 0.0
      %471 = vmatpush1.msra.mxu0 0.0
      %472 = vmatprep.subr.mxu0 0.0
      %473 = vmatpush1.msra.mxu0 0.0
      %474 = vmatprep.mubr.f32.mxu0 0.0
      %475 = vmatmul.mubr.f32.gmra.mrb[0].mxu0 %v405
      %v476 = vpop.f32.mrb[0].mxu0
      %v477 = vadd.f32 %v396, %v476
      %v478 = vpop.f32.mrb[0].mxu0
      %479 = vmatprep.mubr.f32.mxu0 0.0
      %480 = vmatmul.mubr.f32.gmra.mrb[0].mxu0 %v408
      %v481 = vpop.f32.mrb[0].mxu0
      %v482 = vadd.f32 %v401, %v481
      %v483 = vpop.f32.mrb[0].mxu0
      %484 = vdwg.mxu0
      %v485 = vmax.f32 %v477, 0.0
      %v486 = vmax.f32 %v482, 0.0
      %vm487 = vcmask 64512
      %488 = vst.msk [vmem:[%s255] sm:$0xff] %vm487, %v485
      %489 = vst.msk [vmem:[%s255 + $0x8] sm:$0xff] %vm487, %v486
      %p490 = scmp.lt.s32.totalorder %s20, 1
      %s491 = scalar_select %p490, %s20, 1
      %p492 = scmp.lt.s32.totalorder %s21, 0
      %s493 = scalar_select %p492, %s21, 0
      %s494 = smul.addr %s491, 2
      %s495 = sadd.s32 %s493, %s494
      %s496 = smul.addr %s495, 8
      %s497 = scalar_lea.vmem %s5, %s496
      // Predicated region
      $region41: #{tpu_custom_call.1} parent=39 // pred_check
        %p498 = pneg %p160
      $region42: #{tpu_custom_call.1} parent=39 // pred_check_branch
        %500 = sbr.rel (%p498) target = $region44
      $region43: #{tpu_custom_call.1} parent=39 // pred_region
        _
      $region44: #{tpu_custom_call.1} parent=39 // pred_fallthru
        _
    $region40: #{tpu_custom_call.1} parent=5 // pred_fallthru
      _
    %p501 = scmp.le.s32.totalorder 2, %s11
    // Predicated region
    $region45: #{tpu_custom_call.1} parent=5 // pred_check
      %p502 = pneg %p501
    $region46: #{tpu_custom_call.1} parent=5 // pred_check_branch
      %504 = sbr.rel (%p502) target = $region48
    $region47: #{tpu_custom_call.1} parent=5 // pred_region
      %s505 = ssub.s32 %s11, 2
      // Predicated region
      $region49: #{tpu_custom_call.1} parent=47 // pred_check
        %p506 = pneg %p166
      $region50: #{tpu_custom_call.1} parent=47 // pred_check_branch
        %508 = sbr.rel (%p506) target = $region52
      $region51: #{tpu_custom_call.1} parent=47 // pred_region
        %p509 = scmp.lt.s32.totalorder %s22, 1
        %s510 = scalar_select %p509, %s22, 1
        %p511 = scmp.lt.s32.totalorder %s23, 0
        %s512 = scalar_select %p511, %s23, 0
        %s513 = smul.addr %s510, 2
        %s514 = sadd.s32 %s512, %s513
        %s515 = smul.addr %s514, 8
        %s516 = scalar_lea.vmem %s5, %s515
      $region52: #{tpu_custom_call.1} parent=47 // pred_fallthru
        _
    $region48: #{tpu_custom_call.1} parent=5 // pred_fallthru
      _
  $region6: #{tpu_custom_call.1} parent=0 // loop_footer
    %s15 = sadd.s32 1, %s11
  $region7: #{tpu_custom_call.1} parent=0 // loop_footer_branch
    %10 = sbr.rel target = $region3
  $region8: #{tpu_custom_call.1} parent=0 // loop_exit
    _

</llo_original>
